<compile_context>
chip_gen: v6e
topology: v6e:2x2x1
jax: 0.10.0
libtpu: 0.0.40
codegen_flags: <defaults>
</compile_context>

<pallas_src>
import jax
import jax.numpy as jnp
from jax.experimental import pallas as pl
from jax.experimental.pallas import tpu as pltpu


def _startup_kernel(x_ref, ens_ref, rec_ref, w_ref, b_ref, o_ref):
    # f32 merge on the VPU (native dtype — avoids bf16 VALU converts on v5e),
    # cast to bf16 only for the MXU matmul, accumulate in f32.
    combined = (x_ref[...] + ens_ref[0] + rec_ref[0]).astype(jnp.bfloat16)
    proj = jnp.dot(combined, w_ref[0].astype(jnp.bfloat16),
                   preferred_element_type=jnp.float32)          # [TM, H] f32
    # Fused bias already contains  b_i + i * channel_scale.
    o_ref[0] = (proj + b_ref[0]).astype(o_ref.dtype)


def _round_up(v, m):
    return (v + m - 1) // m * m


def _vmem_budget_bytes():
    # Generation-aware VMEM budget: ~48 MiB on v7x (64 MiB/TC), ~96 MiB on
    # v5e/v6e (128 MiB).  Falls back to the conservative v7x figure.
    try:
        info = pltpu.get_tpu_info()
        cap = int(getattr(info, "vmem_capacity_bytes", 64 << 20))
    except Exception:
        cap = 64 << 20
    return max(min(int(cap * 0.75), cap - (16 << 20)), 32 << 20)


def _choose_bs_tile(bs, h, in_bytes, out_bytes, budget):
    """Largest BS tile whose double-buffered footprint fits the VMEM budget."""
    per_row = 2 * h * (3 * in_bytes + out_bytes)   # 3 stream tiles + out, x2 buffers
    fixed = 2 * h * h * 4 + 2 * h * 4              # W_i double buffer + fused bias
    tm_max = int(min(max((budget - fixed) // per_row, 8), 2048))
    if bs <= tm_max:
        tm = _round_up(bs, 8)                      # single tile, f32 sublane aligned
        return tm, tm
    # Prefer MXU/lane-friendly tiles (multiples of 128) that divide BS exactly.
    t = (tm_max // 128) * 128
    while t >= 128:
        if bs % t == 0:
            return t, bs
        t -= 128
    # Otherwise pad BS up to a multiple of the largest 128-aligned tile.
    tm = max((tm_max // 128) * 128, 128)
    return tm, _round_up(bs, tm)


def startup_collection(x, ensemble, recursive, weights, biases, channel_scale,
                       *, out_dtype=None):
    """
    x:             [B, S, H]      shared input_stream
    ensemble:      [N, B, S, H]   ensemble_streams[i]
    recursive:     [N, B, S, H]   recursive_streams[i]
    weights:       [N, H, H]      per-startup projection
    biases:        [N, H]         per-startup bias
    channel_scale: [H]            channel-embedding direction (auxiliary.channel = i)
    returns: [N, B, S, H]  — axis 0 is the module's list of per-startup outputs.
    """
    N, B, S, H = ensemble.shape
    if out_dtype is None:
        out_dtype = x.dtype
    H_orig, BS = H, B * S
    in_bytes = 4                                   # streams merged in f32
    out_bytes = jnp.dtype(out_dtype).itemsize

    # Lane-dense guard: pad H to a multiple of 128 (zero-padded contraction
    # rows of W leave the original output columns unchanged).
    if H % 128 != 0:
        hp = _round_up(H, 128) - H
        x = jnp.pad(x, ((0, 0), (0, 0), (0, hp)))
        ensemble = jnp.pad(ensemble, ((0, 0), (0, 0), (0, 0), (0, hp)))
        recursive = jnp.pad(recursive, ((0, 0), (0, 0), (0, 0), (0, hp)))
        weights = jnp.pad(weights, ((0, 0), (0, hp), (0, hp)))
        biases = jnp.pad(biases, ((0, 0), (0, hp)))
        channel_scale = jnp.pad(channel_scale, ((0, hp),))
        H += hp

    budget = _vmem_budget_bytes()
    tm, bs_pad = _choose_bs_tile(BS, H, in_bytes, out_bytes, budget)
    n_m = bs_pad // tm

    # Native-dtype streams: reshape only (free); pad BS rows only if required.
    x2 = x.reshape(BS, H)
    ens2 = ensemble.reshape(N, BS, H)
    rec2 = recursive.reshape(N, BS, H)
    if bs_pad != BS:
        x2 = jnp.pad(x2, ((0, bs_pad - BS), (0, 0)))
        ens2 = jnp.pad(ens2, ((0, 0), (0, bs_pad - BS), (0, 0)))
        rec2 = jnp.pad(rec2, ((0, 0), (0, bs_pad - BS), (0, 0)))

    # Fold the channel offset (auxiliary.channel == i) into the bias once (tiny).
    fused_bias = (biases.astype(jnp.float32)
                  + jnp.arange(N, dtype=jnp.float32)[:, None]
                  * channel_scale.astype(jnp.float32)).reshape(N, 1, H)

    # Grid order: BS-tile axis outer when tm >= H (shared x DMA'd once per
    # tile); otherwise startup axis outer so W_i stays resident over all tiles.
    m_outer = tm >= H
    # Single-buffer W_i only in the weight-resident order when its double
    # buffer is a meaningful fraction of the budget.
    single_w = (not m_outer) and (2 * H * H * 4 > budget // 8)
    w_buffers = 1 if single_w else 2

    if m_outer:
        grid = (n_m, N)
        x_spec = pl.BlockSpec((tm, H), lambda m, i: (m, 0))
        ens_spec = pl.BlockSpec((1, tm, H), lambda m, i: (i, m, 0))
        w_spec = pl.BlockSpec((1, H, H), lambda m, i: (i, 0, 0))
        b_spec = pl.BlockSpec((1, 1, H), lambda m, i: (i, 0, 0))
        o_spec = pl.BlockSpec((1, tm, H), lambda m, i: (i, m, 0))
    else:
        grid = (N, n_m)
        x_spec = pl.BlockSpec((tm, H), lambda i, m: (m, 0))
        ens_spec = pl.BlockSpec((1, tm, H), lambda i, m: (i, m, 0))
        w_kwargs = {"pipeline_mode": pl.Buffered(1)} if single_w else {}
        w_spec = pl.BlockSpec((1, H, H), lambda i, m: (i, 0, 0), **w_kwargs)
        b_spec = pl.BlockSpec((1, 1, H), lambda i, m: (i, 0, 0))
        o_spec = pl.BlockSpec((1, tm, H), lambda i, m: (i, m, 0))
    rec_spec = ens_spec

    step_bytes = (2 * tm * H * (3 * in_bytes + out_bytes)
                  + w_buffers * H * H * 4
                  + 2 * H * 4)
    vmem_limit = int(max(min(budget, step_bytes + (8 << 20)), 32 << 20))

    cost = pl.CostEstimate(
        flops=2 * N * bs_pad * H * H,
        transcendentals=0,
        bytes_accessed=int((1 if m_outer else N) * bs_pad * H * in_bytes   # x reads
                           + 2 * N * bs_pad * H * in_bytes                 # ens + rec
                           + (n_m if m_outer else 1) * N * H * H * 4       # weights
                           + N * H * 4                                     # fused bias
                           + N * bs_pad * H * out_bytes),                  # output
    )

    out = pl.pallas_call(
        _startup_kernel,
        out_shape=jax.ShapeDtypeStruct((N, bs_pad, H), out_dtype),
        grid=grid,
        in_specs=[x_spec, ens_spec, rec_spec, w_spec, b_spec],
        out_specs=o_spec,
        compiler_params=pltpu.CompilerParams(
            dimension_semantics=("parallel", "parallel"),
            vmem_limit_bytes=vmem_limit),
        cost_estimate=cost,
    )(x2, ens2, rec2, weights, fused_bias)

    return out[:, :BS, :H_orig].reshape(N, B, S, H_orig)


def _reference(x, ensemble, recursive, weights, biases, channel_scale):
    # Matches kernel numerics: f32 three-way merge, bf16 cast for the MXU dot
    # with f32 accumulation, then f32 bias + channel offset.
    N = ensemble.shape[0]
    outs = []
    for i in range(N):
        combined = (x + ensemble[i] + recursive[i]).astype(jnp.bfloat16)
        proj = jnp.einsum("bsh,hk->bsk", combined,
                          weights[i].astype(jnp.bfloat16),
                          preferred_element_type=jnp.float32)
        outs.append(proj + biases[i]
                    + jnp.float32(i) * channel_scale.astype(jnp.float32))
    return jnp.stack(outs)


if __name__ == "__main__":
    # Small demo shapes; H is a multiple of 128 so output stores are lane-dense.
    B, S, H, N = 2, 64, 128, 3

    key = jax.random.PRNGKey(0)
    kx, ke, kr, kw, kb, kc = jax.random.split(key, 6)

    x = jax.random.normal(kx, (B, S, H), dtype=jnp.float32)
    ensemble = jax.random.normal(ke, (N, B, S, H), dtype=jnp.float32)
    recursive = jax.random.normal(kr, (N, B, S, H), dtype=jnp.float32)

    # Deterministic parameter init (synthetic; no checkpoint load).
    weights = jax.random.normal(kw, (N, H, H), dtype=jnp.float32) / jnp.sqrt(H)
    biases = jax.random.normal(kb, (N, H), dtype=jnp.float32) * 0.1
    channel_scale = jax.random.normal(kc, (H,), dtype=jnp.float32) * 0.1

    out = startup_collection(x, ensemble, recursive, weights, biases,
                             channel_scale)
    out = jax.block_until_ready(out)
    assert out.shape == (N, B, S, H)

    ref = _reference(x, ensemble, recursive, weights, biases, channel_scale)
    err = float(jnp.max(jnp.abs(out - ref)))
    assert jnp.allclose(out, ref, atol=2e-2, rtol=2e-2), err

    print("KERNEL_OK")
</pallas_src>

<mosaic_0001>
module attributes {stable_mosaic.version = 11 : i64} {
  func.func @_startup_kernel(%arg0: i32, %arg1: i32, %arg2: memref<128x128xf32, #tpu.memory_space<vmem>>, %arg3: memref<1x128x128xf32, #tpu.memory_space<vmem>>, %arg4: memref<1x128x128xf32, #tpu.memory_space<vmem>>, %arg5: memref<1x128x128xf32, #tpu.memory_space<vmem>>, %arg6: memref<1x1x128xf32, #tpu.memory_space<vmem>>, %arg7: memref<1x128x128xf32, #tpu.memory_space<vmem>>) attributes {dimension_semantics = [#tpu.dimension_semantics<parallel>, #tpu.dimension_semantics<parallel>], iteration_bounds = array<i64: 1, 3>, scalar_prefetch = 0 : i64, scratch_operands = 0 : i64, tpu.core_type = #tpu.core_type<tc>, window_params = [{transform_indices = @transform_0, window_bounds = array<i64: 128, 128>}, {transform_indices = @transform_1, window_bounds = array<i64: 1, 128, 128>}, {transform_indices = @transform_2, window_bounds = array<i64: 1, 128, 128>}, {transform_indices = @transform_3, window_bounds = array<i64: 1, 128, 128>}, {transform_indices = @transform_4, window_bounds = array<i64: 1, 1, 128>}, {transform_indices = @transform_5, window_bounds = array<i64: 1, 128, 128>}]} {
    %c0 = arith.constant 0 : index
    %c0_0 = arith.constant 0 : index
    %0 = vector.load %arg2[%c0, %c0_0] : memref<128x128xf32, #tpu.memory_space<vmem>>, vector<128x128xf32>
    %c0_1 = arith.constant 0 : index
    %c0_2 = arith.constant 0 : index
    %c0_3 = arith.constant 0 : index
    %1 = vector.load %arg3[%c0_1, %c0_2, %c0_3] : memref<1x128x128xf32, #tpu.memory_space<vmem>>, vector<1x128x128xf32>
    %2 = vector.shape_cast %1 : vector<1x128x128xf32> to vector<128x128xf32>
    %3 = arith.addf %0, %2 : vector<128x128xf32>
    %c0_4 = arith.constant 0 : index
    %c0_5 = arith.constant 0 : index
    %c0_6 = arith.constant 0 : index
    %4 = vector.load %arg4[%c0_4, %c0_5, %c0_6] : memref<1x128x128xf32, #tpu.memory_space<vmem>>, vector<1x128x128xf32>
    %5 = vector.shape_cast %4 : vector<1x128x128xf32> to vector<128x128xf32>
    %6 = arith.addf %3, %5 : vector<128x128xf32>
    %7 = arith.truncf %6 : vector<128x128xf32> to vector<128x128xbf16>
    %c0_7 = arith.constant 0 : index
    %c0_8 = arith.constant 0 : index
    %c0_9 = arith.constant 0 : index
    %8 = vector.load %arg5[%c0_7, %c0_8, %c0_9] : memref<1x128x128xf32, #tpu.memory_space<vmem>>, vector<1x128x128xf32>
    %9 = vector.shape_cast %8 : vector<1x128x128xf32> to vector<128x128xf32>
    %10 = arith.truncf %9 : vector<128x128xf32> to vector<128x128xbf16>
    %cst = arith.constant dense<0.000000e+00> : vector<128x128xf32>
    %11 = tpu.matmul %7, %10, %cst {dimension_numbers = #tpu.dot_dimension_numbers<[1], [0], [0], [1], [0, 0, 1, 1], [], []>} : vector<128x128xbf16>, vector<128x128xbf16>, vector<128x128xf32> -> vector<128x128xf32>
    %c0_10 = arith.constant 0 : index
    %c0_11 = arith.constant 0 : index
    %c0_12 = arith.constant 0 : index
    %12 = vector.load %arg6[%c0_10, %c0_11, %c0_12] : memref<1x1x128xf32, #tpu.memory_space<vmem>>, vector<1x1x128xf32>
    %13 = vector.shape_cast %12 : vector<1x1x128xf32> to vector<1x128xf32>
    %14 = vector.broadcast %13 : vector<1x128xf32> to vector<128x128xf32>
    %15 = arith.addf %11, %14 : vector<128x128xf32>
    %c0_13 = arith.constant 0 : index
    %c0_14 = arith.constant 0 : index
    %c0_15 = arith.constant 0 : index
    %16 = vector.load %arg7[%c0_13, %c0_14, %c0_15] : memref<1x128x128xf32, #tpu.memory_space<vmem>>, vector<1x128x128xf32>
    %17 = vector.shape_cast %16 : vector<1x128x128xf32> to vector<128x128xf32>
    %18 = vector.shape_cast %15 : vector<128x128xf32> to vector<1x128x128xf32>
    tpu.vector_store %arg7[%c0_13, %c0_14, %c0_15], %18 {strides = array<i32>} : memref<1x128x128xf32, #tpu.memory_space<vmem>>, vector<1x128x128xf32>,
    return
  }
  func.func @transform_0(%arg0: i32, %arg1: i32) -> (i32, i32) {
    %c0_i32 = arith.constant 0 : i32
    %c0_i32_0 = arith.constant 0 : i32
    return %arg0, %c0_i32 : i32, i32
  }
  func.func @transform_1(%arg0: i32, %arg1: i32) -> (i32, i32, i32) {
    %c0_i32 = arith.constant 0 : i32
    %c0_i32_0 = arith.constant 0 : i32
    return %arg1, %arg0, %c0_i32 : i32, i32, i32
  }
  func.func @transform_2(%arg0: i32, %arg1: i32) -> (i32, i32, i32) {
    %c0_i32 = arith.constant 0 : i32
    %c0_i32_0 = arith.constant 0 : i32
    return %arg1, %arg0, %c0_i32 : i32, i32, i32
  }
  func.func @transform_3(%arg0: i32, %arg1: i32) -> (i32, i32, i32) {
    %c0_i32 = arith.constant 0 : i32
    %c0_i32_0 = arith.constant 0 : i32
    %c0_i32_1 = arith.constant 0 : i32
    return %arg1, %c0_i32, %c0_i32_0 : i32, i32, i32
  }
  func.func @transform_4(%arg0: i32, %arg1: i32) -> (i32, i32, i32) {
    %c0_i32 = arith.constant 0 : i32
    %c0_i32_0 = arith.constant 0 : i32
    %c0_i32_1 = arith.constant 0 : i32
    return %arg1, %c0_i32, %c0_i32_0 : i32, i32, i32
  }
  func.func @transform_5(%arg0: i32, %arg1: i32) -> (i32, i32, i32) {
    %c0_i32 = arith.constant 0 : i32
    %c0_i32_0 = arith.constant 0 : i32
    return %arg1, %arg0, %c0_i32 : i32, i32, i32
  }
}

</mosaic_0001>

<llo_original>
// kernel: tpu_custom_call.1
$region0: #{tpu_custom_call.1}
  #allocation0 [shape = 'u32[]', space=smem, size = 0x4, offset = 0x4, fixed_abs, tag = 'smem constant byte address 0x4 - core index']
  #allocation1 [shape = 'u32[144,128]{1,0:T(1,128)}', space=vmem, size = 0x12000, scoped, tag = 'internal scratch']
  %s0 = inlined_call_operand.hbm [shape: f32[128,128], index: 0, kind: input, shape index: {}]
  %s1 = inlined_call_operand.hbm [shape: f32[3,128,128], index: 1, kind: input, shape index: {}]
  %s2 = inlined_call_operand.hbm [shape: f32[3,128,128], index: 2, kind: input, shape index: {}]
  %s3 = inlined_call_operand.hbm [shape: f32[3,128,128], index: 3, kind: input, shape index: {}]
  %s4 = inlined_call_operand.vmem [shape: f32[3,1,128], index: 4, kind: input, shape index: {}]
  %s5 = inlined_call_operand.hbm [shape: f32[3,128,128], index: 5, kind: output, shape index: {}]
  %s6 = sld [smem:[#allocation0]]
  $region69: #{tpu_custom_call.1} parent=0
    _
  %s8 = ssub.s32 1, %s6
  %s9 = scalar_select 0, %s8, %s6
  $region1: #{tpu_custom_call.1} parent=0
    #allocation2 [shape = 'u8[65536]{0}', space=vmem, size = 0x10000, scoped, tag = 'input window, operand 0, single buffered']
    #allocation3 [shape = 's32[2]{0}', space=sflag, size = 0x8, scoped, tag = 'scoped memory for tpu_custom_call.1']
    #allocation4 [shape = 's32[2]{0}', space=sflag, size = 0x8, scoped, tag = 'scoped memory for tpu_custom_call.1']
    #allocation5 [shape = 'u8[131072]{0}', space=vmem, size = 0x20000, scoped, tag = 'input window, operand 1']
    #allocation6 [shape = 's32[2]{0}', space=sflag, size = 0x8, scoped, tag = 'scoped memory for tpu_custom_call.1']
    #allocation7 [shape = 'u8[131072]{0}', space=vmem, size = 0x20000, scoped, tag = 'input window, operand 2']
    #allocation8 [shape = 'u8[131072]{0}', space=vmem, size = 0x20000, scoped, tag = 'input window, operand 3']
    #allocation9 [shape = 's32[2]{0}', space=sflag, size = 0x8, scoped, tag = 'scoped memory for tpu_custom_call.1']
    #allocation10 [shape = 'u8[131072]{0}', space=vmem, size = 0x20000, scoped, tag = 'output window, operand 0']
    %10 = vsyncpa [#allocation3], 0
    %11 = vsyncpa [#allocation6], 0
    %s12 = scalar_lea.sflag [#allocation6], 1
    %13 = vsyncpa %s12, 0
    %14 = vsyncpa [#allocation9], 0
    %s15 = scalar_lea.sflag [#allocation9], 1
    %16 = vsyncpa %s15, 0
    %17 = vsyncpa [#allocation4], 0
    %s18 = scalar_lea.sflag [#allocation4], 1
    %19 = vsyncpa %s18, 0
    loop: start=0, step=1, limit=5
    $region2: #{tpu_custom_call.1} parent=1 // loop_pre_header
      _
    $region3: #{tpu_custom_call.1} parent=1 // loop_header
      %s21 = sphi 0, %s25
      %p22 = scmp.ge.s32.totalorder %s21, 5
      %s28 = sphi 0, %s40
      %s29 = sphi 0, %s36
      %s30 = sphi 0, %s28
      %s31 = sphi 0, %s29
      %s32 = sphi 0, %s30
      %s33 = sphi 0, %s31
      %s43 = sphi 0, %s45
      %s46 = sphi 0, %s43
      %s47 = sphi 0, %s46
      %s63 = sphi 0, %s47
      %s71 = sphi 0, %s73
      %s74 = sphi 0, %s71
      %s75 = sphi 0, %s74
      %s91 = sphi 0, %s75
      %s99 = sphi 0, %s101
      %s102 = sphi 0, %s99
      %s103 = sphi 0, %s102
      %s119 = sphi 0, %s103
      %s125 = sphi 0, %s127
      %s128 = sphi 0, %s125
      %s129 = sphi 0, %s128
      %s145 = sphi 0, %s129
      %s151 = sphi 0, %s153
      %s154 = sphi 0, %s151
      %s155 = sphi 0, %s154
      %s171 = sphi 0, %s155
      %s179 = sphi 0, %s181
      %s182 = sphi 0, %s179
      %s183 = sphi 0, %s182
      %s199 = sphi 0, %s183
    $region4: #{tpu_custom_call.1} parent=1 // loop_header_branch
      %24 = sbr.rel (%p22) target = $region8
    $region5: #{tpu_custom_call.1} parent=1 // loop_body
      %s26 = ssub.s32 %s21, 1
      %s27 = ssub.s32 %s21, 2
      %s34 = sadd.s32 1, %s29
      %p35 = scmp.ge.s32.totalorder %s34, 3
      %s36 = scalar_select %p35, 0, %s34
      %s37 = sadd.s32 1, %s28
      %s38 = scalar_select %p35, %s37, %s28
      %p39 = scmp.ge.s32.totalorder %s38, 1
      %s40 = scalar_select %p39, 0, %s38
      %s41 = ssub.s32 %s28, %s40
      %p42 = scmp.eq.s32.totalorder %s41, 0
      %s44 = sadd.s32 %s43, 1
      %s45 = scalar_select %p42, %s43, %s44
      %p48 = pneg %p42
      %p49 = scmp.eq.s32.totalorder %s21, 2
      %p50 = por %p48, %p49
      %p51 = scmp.ne.s32.totalorder %s43, %s46
      %p52 = scmp.eq.s32.totalorder %s21, 0
      %p53 = por %p51, %p52
      %p54 = scmp.ne.s32.totalorder %s43, %s46
      %p55 = scmp.eq.s32.totalorder %s26, 2
      %p56 = por %p54, %p55
      %p57 = scmp.ne.s32.totalorder %s46, %s47
      %p58 = scmp.eq.s32.totalorder %s26, 0
      %p59 = por %p57, %p58
      %p60 = scmp.ne.s32.totalorder %s46, %s47
      %p61 = scmp.eq.s32.totalorder %s27, 2
      %p62 = por %p60, %p61
      %p64 = scmp.ne.s32.totalorder %s47, %s63
      %p65 = scmp.eq.s32.totalorder %s27, 0
      %p66 = por %p64, %p65
      %s67 = ssub.s32 %s29, %s36
      %s68 = ssub.s32 %s28, %s40
      %s69 = sor.u32 %s67, %s68
      %p70 = scmp.eq.s32.totalorder %s69, 0
      %s72 = sadd.s32 %s71, 1
      %s73 = scalar_select %p70, %s71, %s72
      %p76 = pneg %p70
      %p77 = scmp.eq.s32.totalorder %s21, 2
      %p78 = por %p76, %p77
      %p79 = scmp.ne.s32.totalorder %s71, %s74
      %p80 = scmp.eq.s32.totalorder %s21, 0
      %p81 = por %p79, %p80
      %p82 = scmp.ne.s32.totalorder %s71, %s74
      %p83 = scmp.eq.s32.totalorder %s26, 2
      %p84 = por %p82, %p83
      %p85 = scmp.ne.s32.totalorder %s74, %s75
      %p86 = scmp.eq.s32.totalorder %s26, 0
      %p87 = por %p85, %p86
      %p88 = scmp.ne.s32.totalorder %s74, %s75
      %p89 = scmp.eq.s32.totalorder %s27, 2
      %p90 = por %p88, %p89
      %p92 = scmp.ne.s32.totalorder %s75, %s91
      %p93 = scmp.eq.s32.totalorder %s27, 0
      %p94 = por %p92, %p93
      %s95 = ssub.s32 %s29, %s36
      %s96 = ssub.s32 %s28, %s40
      %s97 = sor.u32 %s95, %s96
      %p98 = scmp.eq.s32.totalorder %s97, 0
      %s100 = sadd.s32 %s99, 1
      %s101 = scalar_select %p98, %s99, %s100
      %p104 = pneg %p98
      %p105 = scmp.eq.s32.totalorder %s21, 2
      %p106 = por %p104, %p105
      %p107 = scmp.ne.s32.totalorder %s99, %s102
      %p108 = scmp.eq.s32.totalorder %s21, 0
      %p109 = por %p107, %p108
      %p110 = scmp.ne.s32.totalorder %s99, %s102
      %p111 = scmp.eq.s32.totalorder %s26, 2
      %p112 = por %p110, %p111
      %p113 = scmp.ne.s32.totalorder %s102, %s103
      %p114 = scmp.eq.s32.totalorder %s26, 0
      %p115 = por %p113, %p114
      %p116 = scmp.ne.s32.totalorder %s102, %s103
      %p117 = scmp.eq.s32.totalorder %s27, 2
      %p118 = por %p116, %p117
      %p120 = scmp.ne.s32.totalorder %s103, %s119
      %p121 = scmp.eq.s32.totalorder %s27, 0
      %p122 = por %p120, %p121
      %s123 = ssub.s32 %s29, %s36
      %p124 = scmp.eq.s32.totalorder %s123, 0
      %s126 = sadd.s32 %s125, 1
      %s127 = scalar_select %p124, %s125, %s126
      %p130 = pneg %p124
      %p131 = scmp.eq.s32.totalorder %s21, 2
      %p132 = por %p130, %p131
      %p133 = scmp.ne.s32.totalorder %s125, %s128
      %p134 = scmp.eq.s32.totalorder %s21, 0
      %p135 = por %p133, %p134
      %p136 = scmp.ne.s32.totalorder %s125, %s128
      %p137 = scmp.eq.s32.totalorder %s26, 2
      %p138 = por %p136, %p137
      %p139 = scmp.ne.s32.totalorder %s128, %s129
      %p140 = scmp.eq.s32.totalorder %s26, 0
      %p141 = por %p139, %p140
      %p142 = scmp.ne.s32.totalorder %s128, %s129
      %p143 = scmp.eq.s32.totalorder %s27, 2
      %p144 = por %p142, %p143
      %p146 = scmp.ne.s32.totalorder %s129, %s145
      %p147 = scmp.eq.s32.totalorder %s27, 0
      %p148 = por %p146, %p147
      %s149 = ssub.s32 %s29, %s36
      %p150 = scmp.eq.s32.totalorder %s149, 0
      %s152 = sadd.s32 %s151, 1
      %s153 = scalar_select %p150, %s151, %s152
      %p156 = pneg %p150
      %p157 = scmp.eq.s32.totalorder %s21, 2
      %p158 = por %p156, %p157
      %p159 = scmp.ne.s32.totalorder %s151, %s154
      %p160 = scmp.eq.s32.totalorder %s21, 0
      %p161 = por %p159, %p160
      %p162 = scmp.ne.s32.totalorder %s151, %s154
      %p163 = scmp.eq.s32.totalorder %s26, 2
      %p164 = por %p162, %p163
      %p165 = scmp.ne.s32.totalorder %s154, %s155
      %p166 = scmp.eq.s32.totalorder %s26, 0
      %p167 = por %p165, %p166
      %p168 = scmp.ne.s32.totalorder %s154, %s155
      %p169 = scmp.eq.s32.totalorder %s27, 2
      %p170 = por %p168, %p169
      %p172 = scmp.ne.s32.totalorder %s155, %s171
      %p173 = scmp.eq.s32.totalorder %s27, 0
      %p174 = por %p172, %p173
      %s175 = ssub.s32 %s29, %s36
      %s176 = ssub.s32 %s28, %s40
      %s177 = sor.u32 %s175, %s176
      %p178 = scmp.eq.s32.totalorder %s177, 0
      %s180 = sadd.s32 %s179, 1
      %s181 = scalar_select %p178, %s179, %s180
      %p184 = pneg %p178
      %p185 = scmp.eq.s32.totalorder %s21, 2
      %p186 = por %p184, %p185
      %p187 = scmp.ne.s32.totalorder %s179, %s182
      %p188 = scmp.eq.s32.totalorder %s21, 0
      %p189 = por %p187, %p188
      %p190 = scmp.ne.s32.totalorder %s179, %s182
      %p191 = scmp.eq.s32.totalorder %s26, 2
      %p192 = por %p190, %p191
      %p193 = scmp.ne.s32.totalorder %s182, %s183
      %p194 = scmp.eq.s32.totalorder %s26, 0
      %p195 = por %p193, %p194
      %p196 = scmp.ne.s32.totalorder %s182, %s183
      %p197 = scmp.eq.s32.totalorder %s27, 2
      %p198 = por %p196, %p197
      %p200 = scmp.ne.s32.totalorder %s183, %s199
      %p201 = scmp.eq.s32.totalorder %s27, 0
      %p202 = por %p200, %p201
      %p203 = scmp.le.s32.totalorder 1, %s21
      %p204 = scmp.lt.s32.totalorder %s21, 4
      %p205 = pnand %p203, %p204
      %p206 = pneg %p205
      // Predicated region
      $region9: #{tpu_custom_call.1} parent=5 // pred_check
        _
      $region10: #{tpu_custom_call.1} parent=5 // pred_check_branch
        %208 = sbr.rel (%p205) target = $region12
      $region11: #{tpu_custom_call.1} parent=5 // pred_region
        %s209 = ssub.s32 %s21, 1
        // Predicated region
        $region13: #{tpu_custom_call.1} parent=11 // pred_check
          %p210 = pneg %p59
        $region14: #{tpu_custom_call.1} parent=11 // pred_check_branch
          %212 = sbr.rel (%p210) target = $region16
        $region15: #{tpu_custom_call.1} parent=11 // pred_region
          %s213 = smul.u32 16, %s30
          %s215 = ssub.s32 2048, 2048
          %216 = vsyncadd [#allocation3], %s215
          %s217 = smul.addr %s213, 128
          %s218 = scalar_lea.hbm %s0, %s217
          %s219 = sshll.u32 [#allocation2], 4
          %s220 = int_to_ptr.vmem [resolvable:$true] %s219
          %225 = dma.hbm_to_vmem [thread:$0]  %s218, 2048, %s220, [#allocation3], 128, 128, 8
        $region16: #{tpu_custom_call.1} parent=11 // pred_fallthru
          _
      $region12: #{tpu_custom_call.1} parent=5 // pred_fallthru
        _
      %p226 = scmp.lt.s32.totalorder %s21, 3
      // Predicated region
      $region17: #{tpu_custom_call.1} parent=5 // pred_check
        %p227 = pneg %p226
      $region18: #{tpu_custom_call.1} parent=5 // pred_check_branch
        %229 = sbr.rel (%p227) target = $region20
      $region19: #{tpu_custom_call.1} parent=5 // pred_region
        // Predicated region
        $region21: #{tpu_custom_call.1} parent=19 // pred_check
          %p230 = pneg %p81
        $region22: #{tpu_custom_call.1} parent=19 // pred_check_branch
          %232 = sbr.rel (%p230) target = $region24
        $region23: #{tpu_custom_call.1} parent=19 // pred_region
          %s233 = sand.u32 %s21, 1
          %s234 = scalar_lea.sflag [#allocation6], %s233
          %s235 = sand.u32 %s71, 1
          %s236 = smul.addr %s235, 128
          %s237 = scalar_lea.vmem [#allocation5], %s236
          %s238 = smul.u32 16, %s28
          %s240 = ssub.s32 2048, 2048
          %241 = vsyncadd %s234, %s240
          %s242 = smul.addr %s29, 16
          %s243 = sadd.s32 %s238, %s242
          %s244 = smul.addr %s243, 128
          %s245 = scalar_lea.hbm %s1, %s244
          %s246 = sshll.u32 %s237, 4
          %s247 = int_to_ptr.vmem [resolvable:$true] %s246
          %252 = dma.hbm_to_vmem [thread:$0]  %s245, 2048, %s247, %s234, 128, 128, 8
        $region24: #{tpu_custom_call.1} parent=19 // pred_fallthru
          _
        // Predicated region
        $region25: #{tpu_custom_call.1} parent=19 // pred_check
          %p253 = pneg %p109
        $region26: #{tpu_custom_call.1} parent=19 // pred_check_branch
          %255 = sbr.rel (%p253) target = $region28
        $region27: #{tpu_custom_call.1} parent=19 // pred_region
          %s256 = sand.u32 %s21, 1
          %s257 = scalar_lea.sflag [#allocation6], %s256
          %s258 = sand.u32 %s99, 1
          %s259 = smul.addr %s258, 128
          %s260 = scalar_lea.vmem [#allocation7], %s259
          %s261 = smul.u32 16, %s28
          %s263 = ssub.s32 2048, 2048
          %264 = vsyncadd %s257, %s263
          %s265 = smul.addr %s29, 16
          %s266 = sadd.s32 %s261, %s265
          %s267 = smul.addr %s266, 128
          %s268 = scalar_lea.hbm %s2, %s267
          %s269 = sshll.u32 %s260, 4
          %s270 = int_to_ptr.vmem [resolvable:$true] %s269
          %275 = dma.hbm_to_vmem [thread:$0]  %s268, 2048, %s270, %s257, 128, 128, 8
        $region28: #{tpu_custom_call.1} parent=19 // pred_fallthru
          _
        // Predicated region
        $region29: #{tpu_custom_call.1} parent=19 // pred_check
          %p276 = pneg %p135
        $region30: #{tpu_custom_call.1} parent=19 // pred_check_branch
          %278 = sbr.rel (%p276) target = $region32
        $region31: #{tpu_custom_call.1} parent=19 // pred_region
          %s279 = sand.u32 %s125, 1
          %s280 = scalar_lea.sflag [#allocation9], %s279
          %s281 = sand.u32 %s125, 1
          %s282 = smul.addr %s281, 128
          %s283 = scalar_lea.vmem [#allocation8], %s282
          %s285 = ssub.s32 2048, 2048
          %286 = vsyncadd %s280, %s285
          %s287 = smul.addr %s29, 16
          %s288 = smul.addr %s287, 128
          %s289 = scalar_lea.hbm %s3, %s288
          %s290 = sshll.u32 %s283, 4
          %s291 = int_to_ptr.vmem [resolvable:$true] %s290
          %296 = dma.hbm_to_vmem [thread:$0]  %s289, 2048, %s291, %s280, 128, 128, 8
        $region32: #{tpu_custom_call.1} parent=19 // pred_fallthru
          _
        // Predicated region
        $region33: #{tpu_custom_call.1} parent=19 // pred_check
          %p297 = pneg %p161
        $region34: #{tpu_custom_call.1} parent=19 // pred_check_branch
          %299 = sbr.rel (%p297) target = $region36
        $region35: #{tpu_custom_call.1} parent=19 // pred_region
          %p300 = scmp.lt.s32.totalorder %s29, 2
          %s301 = scalar_select %p300, %s29, 2
          %s302 = scalar_lea.vmem %s4, %s301
        $region36: #{tpu_custom_call.1} parent=19 // pred_fallthru
          _
      $region20: #{tpu_custom_call.1} parent=5 // pred_fallthru
        _
      %p303 = scmp.le.s32.totalorder 1, %s21
      %p304 = scmp.lt.s32.totalorder %s21, 4
      %p305 = pnand %p303, %p304
      %p306 = pneg %p305
      // Predicated region
      $region37: #{tpu_custom_call.1} parent=5 // pred_check
        _
      $region38: #{tpu_custom_call.1} parent=5 // pred_check_branch
        %308 = sbr.rel (%p305) target = $region40
      $region39: #{tpu_custom_call.1} parent=5 // pred_region
        %s309 = ssub.s32 %s21, 1
        // Predicated region
        $region41: #{tpu_custom_call.1} parent=39 // pred_check
          %p310 = pneg %p59
        $region42: #{tpu_custom_call.1} parent=39 // pred_check_branch
          %312 = sbr.rel (%p310) target = $region44
        $region43: #{tpu_custom_call.1} parent=39 // pred_region
          %313 = dma.done [#allocation3], 2048
        $region44: #{tpu_custom_call.1} parent=39 // pred_fallthru
          _
        %s314 = sand.u32 %s26, 1
        %s315 = scalar_lea.sflag [#allocation6], %s314
        %s316 = sand.u32 %s74, 1
        %s317 = smul.addr %s316, 128
        %s318 = scalar_lea.vmem [#allocation5], %s317
        // Predicated region
        $region45: #{tpu_custom_call.1} parent=39 // pred_check
          %p319 = pneg %p87
        $region46: #{tpu_custom_call.1} parent=39 // pred_check_branch
          %321 = sbr.rel (%p319) target = $region48
        $region47: #{tpu_custom_call.1} parent=39 // pred_region
          %322 = dma.done %s315, 2048
        $region48: #{tpu_custom_call.1} parent=39 // pred_fallthru
          _
        %s323 = sand.u32 %s26, 1
        %s324 = scalar_lea.sflag [#allocation6], %s323
        %s325 = sand.u32 %s102, 1
        %s326 = smul.addr %s325, 128
        %s327 = scalar_lea.vmem [#allocation7], %s326
        // Predicated region
        $region49: #{tpu_custom_call.1} parent=39 // pred_check
          %p328 = pneg %p115
        $region50: #{tpu_custom_call.1} parent=39 // pred_check_branch
          %330 = sbr.rel (%p328) target = $region52
        $region51: #{tpu_custom_call.1} parent=39 // pred_region
          %331 = dma.done %s324, 2048
        $region52: #{tpu_custom_call.1} parent=39 // pred_fallthru
          _
        %s332 = sand.u32 %s128, 1
        %s333 = scalar_lea.sflag [#allocation9], %s332
        %s334 = sand.u32 %s128, 1
        %s335 = smul.addr %s334, 128
        %s336 = scalar_lea.vmem [#allocation8], %s335
        // Predicated region
        $region53: #{tpu_custom_call.1} parent=39 // pred_check
          %p337 = pneg %p141
        $region54: #{tpu_custom_call.1} parent=39 // pred_check_branch
          %339 = sbr.rel (%p337) target = $region56
        $region55: #{tpu_custom_call.1} parent=39 // pred_region
          %340 = dma.done %s333, 2048
        $region56: #{tpu_custom_call.1} parent=39 // pred_fallthru
          _
        %p341 = pneg %p59
        %p342 = pneg %p56
        %s343 = sand.u32 %s26, 1
        %s344 = scalar_lea.sflag [#allocation6], %s343
        %s345 = sand.u32 %s74, 1
        %s346 = smul.addr %s345, 128
        %s347 = scalar_lea.vmem [#allocation5], %s346
        %p348 = pneg %p87
        %p349 = pneg %p84
        %s350 = sand.u32 %s26, 1
        %s351 = scalar_lea.sflag [#allocation6], %s350
        %s352 = sand.u32 %s102, 1
        %s353 = smul.addr %s352, 128
        %s354 = scalar_lea.vmem [#allocation7], %s353
        %p355 = pneg %p115
        %p356 = pneg %p112
        %s357 = sand.u32 %s128, 1
        %s358 = scalar_lea.sflag [#allocation9], %s357
        %s359 = sand.u32 %s128, 1
        %s360 = smul.addr %s359, 128
        %s361 = scalar_lea.vmem [#allocation8], %s360
        %p362 = pneg %p141
        %p363 = pneg %p138
        %p364 = scmp.lt.s32.totalorder %s31, 2
        %s365 = scalar_select %p364, %s31, 2
        %s366 = scalar_lea.vmem %s4, %s365
        %p367 = pneg %p167
        %p368 = pneg %p164
        %p369 = pneg %p195
        %p370 = pneg %p192
        %s371 = sand.u32 %s182, 1
        %s372 = scalar_lea.sflag [#allocation4], %s371
        %s373 = sand.u32 %s182, 1
        %s374 = smul.addr %s373, 128
        %s375 = scalar_lea.vmem [#allocation10], %s374
        %s376 = smul.u32 16, %s30
        %s377 = smul.u32 16, %s30
        %s378 = smul.u32 16, %s30
        %p379 = scmp.lt.s32.totalorder %s31, 2
        %s380 = scalar_select %p379, %s31, 2
        %s381 = scalar_lea.vmem %s4, %s380
        %s382 = smul.u32 16, %s30
        %v384 = vld [vmem:[#allocation2] sm:$0xff]
        %v385 = vld [vmem:[#allocation2 + $0x8] sm:$0xff]
        %v386 = vld [vmem:[#allocation2 + $0x10] sm:$0xff]
        %v387 = vld [vmem:[#allocation2 + $0x18] sm:$0xff]
        %v388 = vld [vmem:[#allocation2 + $0x20] sm:$0xff]
        %v389 = vld [vmem:[#allocation2 + $0x28] sm:$0xff]
        %v390 = vld [vmem:[#allocation2 + $0x30] sm:$0xff]
        %v391 = vld [vmem:[#allocation2 + $0x38] sm:$0xff]
        %v392 = vld [vmem:[#allocation2 + $0x40] sm:$0xff]
        %v393 = vld [vmem:[#allocation2 + $0x48] sm:$0xff]
        %v394 = vld [vmem:[#allocation2 + $0x50] sm:$0xff]
        %v395 = vld [vmem:[#allocation2 + $0x58] sm:$0xff]
        %v396 = vld [vmem:[#allocation2 + $0x60] sm:$0xff]
        %v397 = vld [vmem:[#allocation2 + $0x68] sm:$0xff]
        %v398 = vld [vmem:[#allocation2 + $0x70] sm:$0xff]
        %v399 = vld [vmem:[#allocation2 + $0x78] sm:$0xff]
        %v400 = vld [vmem:[%s318] sm:$0xff]
        %v401 = vld [vmem:[%s318 + $0x8] sm:$0xff]
        %v402 = vld [vmem:[%s318 + $0x10] sm:$0xff]
        %v403 = vld [vmem:[%s318 + $0x18] sm:$0xff]
        %v404 = vld [vmem:[%s318 + $0x20] sm:$0xff]
        %v405 = vld [vmem:[%s318 + $0x28] sm:$0xff]
        %v406 = vld [vmem:[%s318 + $0x30] sm:$0xff]
        %v407 = vld [vmem:[%s318 + $0x38] sm:$0xff]
        %v408 = vld [vmem:[%s318 + $0x40] sm:$0xff]
        %v409 = vld [vmem:[%s318 + $0x48] sm:$0xff]
        %v410 = vld [vmem:[%s318 + $0x50] sm:$0xff]
        %v411 = vld [vmem:[%s318 + $0x58] sm:$0xff]
        %v412 = vld [vmem:[%s318 + $0x60] sm:$0xff]
        %v413 = vld [vmem:[%s318 + $0x68] sm:$0xff]
        %v414 = vld [vmem:[%s318 + $0x70] sm:$0xff]
        %v415 = vld [vmem:[%s318 + $0x78] sm:$0xff]
        %v416 = vadd.f32 %v384, %v400
        %v417 = vadd.f32 %v385, %v401
        %v418 = vadd.f32 %v386, %v402
        %v419 = vadd.f32 %v387, %v403
        %v420 = vadd.f32 %v388, %v404
        %v421 = vadd.f32 %v389, %v405
        %v422 = vadd.f32 %v390, %v406
        %v423 = vadd.f32 %v391, %v407
        %v424 = vadd.f32 %v392, %v408
        %v425 = vadd.f32 %v393, %v409
        %v426 = vadd.f32 %v394, %v410
        %v427 = vadd.f32 %v395, %v411
        %v428 = vadd.f32 %v396, %v412
        %v429 = vadd.f32 %v397, %v413
        %v430 = vadd.f32 %v398, %v414
        %v431 = vadd.f32 %v399, %v415
        %v432 = vld [vmem:[%s327] sm:$0xff]
        %v433 = vld [vmem:[%s327 + $0x8] sm:$0xff]
        %v434 = vld [vmem:[%s327 + $0x10] sm:$0xff]
        %v435 = vld [vmem:[%s327 + $0x18] sm:$0xff]
        %v436 = vld [vmem:[%s327 + $0x20] sm:$0xff]
        %v437 = vld [vmem:[%s327 + $0x28] sm:$0xff]
        %v438 = vld [vmem:[%s327 + $0x30] sm:$0xff]
        %v439 = vld [vmem:[%s327 + $0x38] sm:$0xff]
        %v440 = vld [vmem:[%s327 + $0x40] sm:$0xff]
        %v441 = vld [vmem:[%s327 + $0x48] sm:$0xff]
        %v442 = vld [vmem:[%s327 + $0x50] sm:$0xff]
        %v443 = vld [vmem:[%s327 + $0x58] sm:$0xff]
        %v444 = vld [vmem:[%s327 + $0x60] sm:$0xff]
        %v445 = vld [vmem:[%s327 + $0x68] sm:$0xff]
        %v446 = vld [vmem:[%s327 + $0x70] sm:$0xff]
        %v447 = vld [vmem:[%s327 + $0x78] sm:$0xff]
        %v448 = vadd.f32 %v416, %v432
        %v449 = vadd.f32 %v417, %v433
        %v450 = vadd.f32 %v418, %v434
        %v451 = vadd.f32 %v419, %v435
        %v452 = vadd.f32 %v420, %v436
        %v453 = vadd.f32 %v421, %v437
        %v454 = vadd.f32 %v422, %v438
        %v455 = vadd.f32 %v423, %v439
        %v456 = vadd.f32 %v424, %v440
        %v457 = vadd.f32 %v425, %v441
        %v458 = vadd.f32 %v426, %v442
        %v459 = vadd.f32 %v427, %v443
        %v460 = vadd.f32 %v428, %v444
        %v461 = vadd.f32 %v429, %v445
        %v462 = vadd.f32 %v430, %v446
        %v463 = vadd.f32 %v431, %v447
        %v464 = vpack.c.bf16 %v449, %v448
        %v465 = vpack.c.bf16 %v451, %v450
        %v466 = vpack.c.bf16 %v453, %v452
        %v467 = vpack.c.bf16 %v455, %v454
        %v468 = vpack.c.bf16 %v457, %v456
        %v469 = vpack.c.bf16 %v459, %v458
        %v470 = vpack.c.bf16 %v461, %v460
        %v471 = vpack.c.bf16 %v463, %v462
        %v472 = vld [vmem:[%s336] sm:$0xff]
        %v473 = vld [vmem:[%s336 + $0x8] sm:$0xff]
        %v474 = vld [vmem:[%s336 + $0x10] sm:$0xff]
        %v475 = vld [vmem:[%s336 + $0x18] sm:$0xff]
        %v476 = vld [vmem:[%s336 + $0x20] sm:$0xff]
        %v477 = vld [vmem:[%s336 + $0x28] sm:$0xff]
        %v478 = vld [vmem:[%s336 + $0x30] sm:$0xff]
        %v479 = vld [vmem:[%s336 + $0x38] sm:$0xff]
        %v480 = vld [vmem:[%s336 + $0x40] sm:$0xff]
        %v481 = vld [vmem:[%s336 + $0x48] sm:$0xff]
        %v482 = vld [vmem:[%s336 + $0x50] sm:$0xff]
        %v483 = vld [vmem:[%s336 + $0x58] sm:$0xff]
        %v484 = vld [vmem:[%s336 + $0x60] sm:$0xff]
        %v485 = vld [vmem:[%s336 + $0x68] sm:$0xff]
        %v486 = vld [vmem:[%s336 + $0x70] sm:$0xff]
        %v487 = vld [vmem:[%s336 + $0x78] sm:$0xff]
        %v488 = vpack.c.bf16 %v473, %v472
        %v489 = vpack.c.bf16 %v475, %v474
        %v490 = vpack.c.bf16 %v477, %v476
        %v491 = vpack.c.bf16 %v479, %v478
        %v492 = vpack.c.bf16 %v481, %v480
        %v493 = vpack.c.bf16 %v483, %v482
        %v494 = vpack.c.bf16 %v485, %v484
        %v495 = vpack.c.bf16 %v487, %v486
        %v496 = vld [vmem:[%s381] sm:$0x1]
        %v498 = vlaneseq
        %v499 = vshrl.u32 %v498, 7
        %v500 = vsub.s32 0, %v499
        %v501 = vrot.slane %v496, %v500
        %503 = vmatprep.subr.bf16.mxu0 0
        %504 = vmatpush1.bf16.msra.mxu0 %v495
        %505 = vmatprep.subr.bf16.mxu0 0
        %506 = vmatpush1.bf16.msra.mxu0 %v494
        %507 = vmatprep.subr.bf16.mxu0 0
        %508 = vmatpush1.bf16.msra.mxu0 %v493
        %509 = vmatprep.subr.bf16.mxu0 0
        %510 = vmatpush1.bf16.msra.mxu0 %v492
        %511 = vmatprep.subr.bf16.mxu0 0
        %512 = vmatpush1.bf16.msra.mxu0 %v491
        %513 = vmatprep.subr.bf16.mxu0 0
        %514 = vmatpush1.bf16.msra.mxu0 %v490
        %515 = vmatprep.subr.bf16.mxu0 0
        %516 = vmatpush1.bf16.msra.mxu0 %v489
        %517 = vmatprep.subr.bf16.mxu0 0
        %518 = vmatpush1.bf16.msra.mxu0 %v488
        %519 = vmatprep.subr.bf16.mxu0 0
        %520 = vmatpush2.bf16.msra.mxu0 0
        %521 = vmatprep.subr.bf16.mxu0 0
        %522 = vmatpush2.bf16.msra.mxu0 0
        %523 = vmatprep.subr.bf16.mxu0 0
        %524 = vmatpush2.bf16.msra.mxu0 0
        %525 = vmatprep.subr.bf16.mxu0 0
        %526 = vmatpush2.bf16.msra.mxu0 0
        %527 = vmatprep.subr.bf16.mxu0 0
        %528 = vmatpush2.bf16.msra.mxu0 0
        %529 = vmatprep.subr.bf16.mxu0 0
        %530 = vmatpush2.bf16.msra.mxu0 0
        %531 = vmatprep.subr.bf16.mxu0 0
        %532 = vmatpush2.bf16.msra.mxu0 0
        %533 = vmatprep.subr.bf16.mxu0 0
        %534 = vmatpush2.bf16.msra.mxu0 0
        %535 = vmatprep.mubr.bf16.mxu0 0
        %536 = vmatmul.mubr.bf16.gmra.mxu0 %v464
        %v537 = vpop.f32.mrf.mxu0
        %v538 = vadd.f32 %v501, %v537
        %v539 = vpop.f32.mrf.mxu0
        %v540 = vpop.f32.mrf.mxu0
        %v541 = vadd.f32 %v501, %v540
        %v542 = vpop.f32.mrf.mxu0
        %543 = vmatprep.mubr.bf16.mxu0 0
        %544 = vmatmul.mubr.bf16.gmra.mxu0 %v465
        %v545 = vpop.f32.mrf.mxu0
        %v546 = vadd.f32 %v501, %v545
        %v547 = vpop.f32.mrf.mxu0
        %v548 = vpop.f32.mrf.mxu0
        %v549 = vadd.f32 %v501, %v548
        %v550 = vpop.f32.mrf.mxu0
        %551 = vmatprep.mubr.bf16.mxu0 0
        %552 = vmatmul.mubr.bf16.gmra.mxu0 %v466
        %v553 = vpop.f32.mrf.mxu0
        %v554 = vadd.f32 %v501, %v553
        %v555 = vpop.f32.mrf.mxu0
        %v556 = vpop.f32.mrf.mxu0
        %v557 = vadd.f32 %v501, %v556
        %v558 = vpop.f32.mrf.mxu0
        %559 = vmatprep.mubr.bf16.mxu0 0
        %560 = vmatmul.mubr.bf16.gmra.mxu0 %v467
        %v561 = vpop.f32.mrf.mxu0
        %v562 = vadd.f32 %v501, %v561
        %v563 = vpop.f32.mrf.mxu0
        %v564 = vpop.f32.mrf.mxu0
        %v565 = vadd.f32 %v501, %v564
        %v566 = vpop.f32.mrf.mxu0
        %567 = vmatprep.mubr.bf16.mxu0 0
        %568 = vmatmul.mubr.bf16.gmra.mxu0 %v468
        %v569 = vpop.f32.mrf.mxu0
        %v570 = vadd.f32 %v501, %v569
        %v571 = vpop.f32.mrf.mxu0
        %v572 = vpop.f32.mrf.mxu0
        %v573 = vadd.f32 %v501, %v572
        %v574 = vpop.f32.mrf.mxu0
        %575 = vmatprep.mubr.bf16.mxu0 0
        %576 = vmatmul.mubr.bf16.gmra.mxu0 %v469
        %v577 = vpop.f32.mrf.mxu0
        %v578 = vadd.f32 %v501, %v577
        %v579 = vpop.f32.mrf.mxu0
        %v580 = vpop.f32.mrf.mxu0
        %v581 = vadd.f32 %v501, %v580
        %v582 = vpop.f32.mrf.mxu0
        %583 = vmatprep.mubr.bf16.mxu0 0
        %584 = vmatmul.mubr.bf16.gmra.mxu0 %v470
        %v585 = vpop.f32.mrf.mxu0
        %v586 = vadd.f32 %v501, %v585
        %v587 = vpop.f32.mrf.mxu0
        %v588 = vpop.f32.mrf.mxu0
        %v589 = vadd.f32 %v501, %v588
        %v590 = vpop.f32.mrf.mxu0
        %591 = vmatprep.mubr.bf16.mxu0 0
        %592 = vmatmul.mubr.bf16.gmra.mxu0 %v471
        %v593 = vpop.f32.mrf.mxu0
        %v594 = vadd.f32 %v501, %v593
        %v595 = vpop.f32.mrf.mxu0
        %v596 = vpop.f32.mrf.mxu0
        %v597 = vadd.f32 %v501, %v596
        %v598 = vpop.f32.mrf.mxu0
        %599 = vdwg.mxu0
        %600 = vst [vmem:[%s375] sm:$0xff] %v538
        %601 = vst [vmem:[%s375 + $0x8] sm:$0xff] %v541
        %602 = vst [vmem:[%s375 + $0x10] sm:$0xff] %v546
        %603 = vst [vmem:[%s375 + $0x18] sm:$0xff] %v549
        %604 = vst [vmem:[%s375 + $0x20] sm:$0xff] %v554
        %605 = vst [vmem:[%s375 + $0x28] sm:$0xff] %v557
        %606 = vst [vmem:[%s375 + $0x30] sm:$0xff] %v562
        %607 = vst [vmem:[%s375 + $0x38] sm:$0xff] %v565
        %608 = vst [vmem:[%s375 + $0x40] sm:$0xff] %v570
        %609 = vst [vmem:[%s375 + $0x48] sm:$0xff] %v573
        %610 = vst [vmem:[%s375 + $0x50] sm:$0xff] %v578
        %611 = vst [vmem:[%s375 + $0x58] sm:$0xff] %v581
        %612 = vst [vmem:[%s375 + $0x60] sm:$0xff] %v586
        %613 = vst [vmem:[%s375 + $0x68] sm:$0xff] %v589
        %614 = vst [vmem:[%s375 + $0x70] sm:$0xff] %v594
        %615 = vst [vmem:[%s375 + $0x78] sm:$0xff] %v597
        %s616 = sand.u32 %s182, 1
        %s617 = scalar_lea.sflag [#allocation4], %s616
        %s618 = sand.u32 %s182, 1
        %s619 = smul.addr %s618, 128
        %s620 = scalar_lea.vmem [#allocation10], %s619
        // Predicated region
        $region57: #{tpu_custom_call.1} parent=39 // pred_check
          %p621 = pneg %p192
        $region58: #{tpu_custom_call.1} parent=39 // pred_check_branch
          %623 = sbr.rel (%p621) target = $region60
        $region59: #{tpu_custom_call.1} parent=39 // pred_region
          %s624 = smul.u32 16, %s30
          %s626 = ssub.s32 2048, 2048
          %627 = vsyncadd %s617, %s626
          %s628 = smul.addr %s31, 16
          %s629 = sadd.s32 %s624, %s628
          %s630 = smul.addr %s629, 128
          %s631 = scalar_lea.hbm %s5, %s630
          %s632 = sshll.u32 %s620, 4
          %s633 = int_to_ptr.vmem [resolvable:$true] %s632
          %638 = dma.vmem_to_hbm [thread:$0]  %s633, 2048, %s631, %s617, 128, 128, 8
        $region60: #{tpu_custom_call.1} parent=39 // pred_fallthru
          _
      $region40: #{tpu_custom_call.1} parent=5 // pred_fallthru
        _
      %p639 = scmp.le.s32.totalorder 2, %s21
      // Predicated region
      $region61: #{tpu_custom_call.1} parent=5 // pred_check
        %p640 = pneg %p639
      $region62: #{tpu_custom_call.1} parent=5 // pred_check_branch
        %642 = sbr.rel (%p640) target = $region64
      $region63: #{tpu_custom_call.1} parent=5 // pred_region
        %s643 = ssub.s32 %s21, 2
        // Predicated region
        $region65: #{tpu_custom_call.1} parent=63 // pred_check
          %p644 = pneg %p198
        $region66: #{tpu_custom_call.1} parent=63 // pred_check_branch
          %646 = sbr.rel (%p644) target = $region68
        $region67: #{tpu_custom_call.1} parent=63 // pred_region
          %s647 = sand.u32 %s183, 1
          %s648 = scalar_lea.sflag [#allocation4], %s647
          %s649 = sand.u32 %s183, 1
          %s650 = smul.addr %s649, 128
          %s651 = scalar_lea.vmem [#allocation10], %s650
          %652 = dma.done %s648, 2048
        $region68: #{tpu_custom_call.1} parent=63 // pred_fallthru
          _
      $region64: #{tpu_custom_call.1} parent=5 // pred_fallthru
        _
    $region6: #{tpu_custom_call.1} parent=1 // loop_footer
      %s25 = sadd.s32 1, %s21
    $region7: #{tpu_custom_call.1} parent=1 // loop_footer_branch
      %20 = sbr.rel target = $region3
    $region8: #{tpu_custom_call.1} parent=1 // loop_exit
      _
    %653 = vsyncpa [#allocation3], 1
    %s654 = scalar_lea.sflag [#allocation3], 1
    %655 = vsyncpa %s654, 1
    %656 = vsyncpa [#allocation6], 1
    %s657 = scalar_lea.sflag [#allocation6], 1
    %658 = vsyncpa %s657, 1
    %659 = vsyncpa [#allocation9], 1
    %s660 = scalar_lea.sflag [#allocation9], 1
    %661 = vsyncpa %s660, 1
    %662 = vsyncpa [#allocation4], 1
    %s663 = scalar_lea.sflag [#allocation4], 1
    %664 = vsyncpa %s663, 1

</llo_original>
